<compile_context>
chip_gen: v7x
topology: tpu7x:2x2x1
jax: 0.10.0
libtpu: 0.0.40
codegen_flags: <defaults>
</compile_context>

<pallas_src>
import jax
import jax.numpy as jnp
from jax.experimental import pallas as pl
from jax.experimental.pallas import tpu as pltpu


# ----------------------------------------------------------------------------
# Kernels
# ----------------------------------------------------------------------------
def _copy_block_kernel(x_ref, o_ref):
    """Lane-dense tile copy: in/out blocks have identical (tile_r, tile_c) shape."""
    o_ref[...] = x_ref[...]


def _chomp_prefix_kernel(x_ref, o_ref):
    """Short-time fallback: read the full row, store only the first L_out columns."""
    o_ref[...] = x_ref[:, : o_ref.shape[-1]]


# ----------------------------------------------------------------------------
# Helpers
# ----------------------------------------------------------------------------
def _round_up(a, m):
    return ((a + m - 1) // m) * m


def _sublane_granule(dtype):
    # Sub-32-bit dtypes pack along sublanes: a bf16 vreg is [16,128], int8 [32,128].
    itemsize = jnp.dtype(dtype).itemsize
    return max(8, 32 // max(itemsize, 1))


def _vmem_physical_bytes():
    try:
        return int(pltpu.get_tpu_info().vmem_capacity_bytes)
    except Exception:
        # Conservative fallback (v7x has 64 MiB per TensorCore).
        return 64 * 1024 * 1024


# ----------------------------------------------------------------------------
# Wrapper
# ----------------------------------------------------------------------------
def chomp1d(x, chomp_size):
    """Pallas equivalent of Chomp1d.forward: x[:, :, :-chomp_size].contiguous().

    x : [B, C, L]  ->  [B, C, L - chomp_size]
    """
    B, C, L = x.shape
    # NOTE: PyTorch x[:, :, :-0] would return an *empty* tensor; we require a
    # strictly positive chomp (the only way Chomp1d is used inside a TCN).
    assert 0 < chomp_size < L, "chomp_size must be in (0, L)"
    L_out = L - chomp_size

    R = B * C
    x2 = x.reshape(R, L)

    itemsize = jnp.dtype(x.dtype).itemsize
    granule = _sublane_granule(x.dtype)

    vmem_physical = _vmem_physical_bytes()
    # Budget for (in + out) tiles, each double-buffered by the BlockSpec
    # pipeline, with headroom under the physical capacity
    # (~42 MiB on v5e/v6e, ~21 MiB on v7x).
    vmem_budget = vmem_physical // 3

    if L_out >= 128:
        # --------------------------------------------------------------------
        # Lane-tiled path: 2-D grid, time tiles are multiples of 128 lanes.
        # Input and output blocks share the same (tile_r, tile_c) shape and
        # block index, so the chomped tail is not DMA'd and the bulk of the
        # stores are unmasked; only the final ragged time block is masked.
        # --------------------------------------------------------------------
        tile_c = min(2048, (L_out // 128) * 128)

        per_row_bytes = 4 * tile_c * itemsize           # in + out, double-buffered
        tile_r = vmem_budget // per_row_bytes
        tile_r = max(granule, (tile_r // granule) * granule)
        if tile_r >= R:
            tile_r = R

        n_col = pl.cdiv(L_out, tile_c)
        # Guarantee >=2 grid steps when legally possible (v7x megacore: a
        # (1,1) grid would leave one TensorCore idle).
        if n_col == 1 and tile_r == R and R >= 2 * granule:
            tile_r = _round_up(pl.cdiv(R, 2), granule)
            if tile_r >= R:
                tile_r = R

        block_bytes = tile_r * tile_c * itemsize
        vmem_limit = int(
            min(vmem_physical * 3 // 4,
                max(32 * 1024 * 1024, 4 * block_bytes + (4 << 20)))
        )

        grid = (pl.cdiv(R, tile_r), n_col)
        out2 = pl.pallas_call(
            _copy_block_kernel,
            out_shape=jax.ShapeDtypeStruct((R, L_out), x.dtype),
            grid=grid,
            in_specs=[pl.BlockSpec((tile_r, tile_c), lambda i, j: (i, j))],
            out_specs=pl.BlockSpec((tile_r, tile_c), lambda i, j: (i, j)),
            compiler_params=pltpu.CompilerParams(
                dimension_semantics=("parallel", "parallel"),
                vmem_limit_bytes=vmem_limit,
            ),
        )(x2)
    else:
        # --------------------------------------------------------------------
        # Short-time fallback (L_out < 128): the (8,128) rule forces full-dim
        # time blocks, so each block reads the whole row and stores the prefix.
        # The wasted tail read is at most chomp_size/L of a tiny tensor.
        # --------------------------------------------------------------------
        per_row_bytes = 2 * (L + L_out) * itemsize      # in + out, double-buffered
        tile_r = vmem_budget // per_row_bytes
        tile_r = max(granule, (tile_r // granule) * granule)
        if tile_r >= R:
            tile_r = R
        # Split rows into >=2 blocks when legally possible (v7x megacore).
        if tile_r == R and R >= 2 * granule:
            tile_r = _round_up(pl.cdiv(R, 2), granule)
            if tile_r >= R:
                tile_r = R

        block_bytes = tile_r * (L + L_out) * itemsize
        vmem_limit = int(
            min(vmem_physical * 3 // 4,
                max(32 * 1024 * 1024, 2 * block_bytes + (4 << 20)))
        )

        grid = (pl.cdiv(R, tile_r),)
        out2 = pl.pallas_call(
            _chomp_prefix_kernel,
            out_shape=jax.ShapeDtypeStruct((R, L_out), x.dtype),
            grid=grid,
            in_specs=[pl.BlockSpec((tile_r, L), lambda i: (i, 0))],
            out_specs=pl.BlockSpec((tile_r, L_out), lambda i: (i, 0)),
            compiler_params=pltpu.CompilerParams(
                dimension_semantics=("parallel",),
                vmem_limit_bytes=vmem_limit,
            ),
        )(x2)

    return out2.reshape(B, C, L_out)


# ----------------------------------------------------------------------------
# Self-test
# ----------------------------------------------------------------------------
if __name__ == "__main__":
    key = jax.random.PRNGKey(0)
    k1, k2 = jax.random.split(key)

    # Case 1: small TCN-style shapes, x: [batch, channels, time],
    # chomp_size = (kernel_size - 1) * dilation.  Exercises the fallback path.
    B, C, L = 2, 4, 16
    chomp_size = 2
    x = jax.random.normal(k1, (B, C, L), jnp.float32)

    out = jax.block_until_ready(chomp1d(x, chomp_size))
    ref = x[:, :, :-chomp_size]
    assert out.shape == (B, C, L - chomp_size), out.shape
    assert jnp.array_equal(out, ref), "Pallas Chomp1d (fallback path) mismatch"

    # Case 2: larger time axis with a ragged (non-128-multiple) L_out and a
    # packed dtype.  Exercises the lane-tiled 2-D-grid path.
    B2, C2, L2, chomp2 = 2, 8, 384, 4          # L_out = 380
    xb = jax.random.normal(k2, (B2, C2, L2), jnp.float32).astype(jnp.bfloat16)

    out2 = jax.block_until_ready(chomp1d(xb, chomp2))
    ref2 = xb[:, :, :-chomp2]
    assert out2.shape == (B2, C2, L2 - chomp2), out2.shape
    assert jnp.array_equal(out2, ref2), "Pallas Chomp1d (tiled path) mismatch"

    print("KERNEL_OK")
</pallas_src>

<mosaic_0001>
module attributes {stable_mosaic.version = 11 : i64} {
  func.func @_chomp_prefix_kernel(%arg0: i32, %arg1: memref<8x16xf32, #tpu.memory_space<vmem>>, %arg2: memref<8x14xf32, #tpu.memory_space<vmem>>) attributes {dimension_semantics = [#tpu.dimension_semantics<parallel>], iteration_bounds = array<i64: 1>, scalar_prefetch = 0 : i64, scratch_operands = 0 : i64, tpu.core_type = #tpu.core_type<tc>, window_params = [{transform_indices = @transform_0, window_bounds = array<i64: 8, 16>}, {transform_indices = @transform_1, window_bounds = array<i64: 8, 14>}]} {
    %c0 = arith.constant 0 : index
    %c0_0 = arith.constant 0 : index
    %0 = vector.load %arg1[%c0, %c0_0] : memref<8x16xf32, #tpu.memory_space<vmem>>, vector<8x14xf32>
    %c0_1 = arith.constant 0 : index
    %c0_2 = arith.constant 0 : index
    %1 = vector.load %arg2[%c0_1, %c0_2] : memref<8x14xf32, #tpu.memory_space<vmem>>, vector<8x14xf32>
    tpu.vector_store %arg2[%c0_1, %c0_2], %0 {strides = array<i32>} : memref<8x14xf32, #tpu.memory_space<vmem>>, vector<8x14xf32>,
    return
  }
  func.func @transform_0(%arg0: i32) -> (i32, i32) {
    %c0_i32 = arith.constant 0 : i32
    %c0_i32_0 = arith.constant 0 : i32
    return %arg0, %c0_i32 : i32, i32
  }
  func.func @transform_1(%arg0: i32) -> (i32, i32) {
    %c0_i32 = arith.constant 0 : i32
    %c0_i32_0 = arith.constant 0 : i32
    return %arg0, %c0_i32 : i32, i32
  }
}

</mosaic_0001>

<llo_original>
// kernel: tpu_custom_call.1
$region0: #{tpu_custom_call.1}
  #allocation0 [shape = 'u32[]', space=smem, size = 0x4, offset = 0x4, fixed_abs, tag = 'smem constant byte address 0x4 - core index']
  #allocation1 [shape = 'u32[144,128]{1,0:T(1,128)}', space=vmem, size = 0x12000, scoped, tag = 'internal scratch']
  %s0 = inlined_call_operand.hbm [shape: f32[8,16], index: 0, kind: input, shape index: {}]
  %s1 = inlined_call_operand.hbm [shape: f32[8,14], index: 1, kind: output, shape index: {}]
  %s2 = sld [smem:[#allocation0]]
  $region18: #{tpu_custom_call.1} parent=0
    _
  %s4 = ssub.s32 1, %s2
  %s5 = scalar_select 0, %s4, %s2
  $region1: #{tpu_custom_call.1} parent=0
    #allocation2 [shape = 'u8[4096]{0}', space=vmem, size = 0x1000, scoped, tag = 'input window, operand 0, single buffered']
    #allocation3 [shape = 's32[1]{0}', space=sflag, size = 0x4, scoped, tag = 'scoped memory for tpu_custom_call.1']
    #allocation4 [shape = 's32[1]{0}', space=sflag, size = 0x4, scoped, tag = 'scoped memory for tpu_custom_call.1']
    #allocation5 [shape = 'u8[4096]{0}', space=vmem, size = 0x1000, scoped, tag = 'output window, operand 0, single buffered']
    %6 = vsyncpa [#allocation3], 0
    %7 = vsyncpa [#allocation4], 0
    // Predicated region
    $region2: #{tpu_custom_call.1} parent=1 // pred_check
      _
    $region3: #{tpu_custom_call.1} parent=1 // pred_check_branch
      %9 = sbr.rel (0) target = $region5
    $region4: #{tpu_custom_call.1} parent=1 // pred_region
      %s11 = ssub.s32 128, 128
      %12 = vsyncadd [#allocation3], %s11
      %s14 = sshll.u32 [#allocation2], 4
      %s15 = int_to_ptr.vmem [resolvable:$true] %s14
      %17 = dma.hbm_to_vmem [thread:$0]  %s0, 128, %s15, [#allocation3]
    $region5: #{tpu_custom_call.1} parent=1 // pred_fallthru
      _
    // Predicated region
    $region6: #{tpu_custom_call.1} parent=1 // pred_check
      _
    $region7: #{tpu_custom_call.1} parent=1 // pred_check_branch
      %19 = sbr.rel (0) target = $region9
    $region8: #{tpu_custom_call.1} parent=1 // pred_region
      %20 = dma.done [#allocation3], 128
    $region9: #{tpu_custom_call.1} parent=1 // pred_fallthru
      _
    %v21 = vld [vmem:[#allocation2] sm:$0xff]
    %vm22 = vcmask 113664
    %23 = vst.msk [vmem:[#allocation5] sm:$0xff] %vm22, %v21
    // Predicated region
    $region10: #{tpu_custom_call.1} parent=1 // pred_check
      _
    $region11: #{tpu_custom_call.1} parent=1 // pred_check_branch
      %25 = sbr.rel (0) target = $region13
    $region12: #{tpu_custom_call.1} parent=1 // pred_region
      %s27 = ssub.s32 128, 128
      %28 = vsyncadd [#allocation4], %s27
      %s30 = sshll.u32 [#allocation5], 4
      %s31 = int_to_ptr.vmem [resolvable:$true] %s30
      %33 = dma.vmem_to_hbm [thread:$0]  %s31, 128, %s1, [#allocation4]
    $region13: #{tpu_custom_call.1} parent=1 // pred_fallthru
      _
    // Predicated region
    $region14: #{tpu_custom_call.1} parent=1 // pred_check
      _
    $region15: #{tpu_custom_call.1} parent=1 // pred_check_branch
      %35 = sbr.rel (0) target = $region17
    $region16: #{tpu_custom_call.1} parent=1 // pred_region
      %36 = dma.done [#allocation4], 128
    $region17: #{tpu_custom_call.1} parent=1 // pred_fallthru
      _
    %37 = vsyncpa [#allocation3], 1
    %38 = vsyncpa [#allocation4], 1

</llo_original>
